<compile_context>
chip_gen: v5e
topology: v5e:2x2
jax: 0.10.0
libtpu: 0.0.40
codegen_flags: <defaults>
</compile_context>

<pallas_src>
import functools

import numpy as np
import jax
import jax.numpy as jnp
from jax import lax
from jax.experimental import pallas as pl
from jax.experimental.pallas import tpu as pltpu

_LANE = 128
_SUBLANE = 8


def _round_up(x, m):
    return (x + m - 1) // m * m


def _vmem_limit_bytes():
    """Scoped VMEM limit: ~75% of physical (96 MiB v5e/v6e, 48 MiB v7x)."""
    cap = 64 * 1024 * 1024
    try:
        cap = int(pltpu.get_tpu_info().vmem_capacity_bytes)
    except Exception:
        pass
    return max(32 * 1024 * 1024, min(cap * 3 // 4, cap - 16 * 1024 * 1024))


def _pick_n_blk(N):
    """Largest multiple-of-8 divisor of N (<= 64) keeping >= 2 batch blocks."""
    if N <= 8 or N % 8 != 0:
        return N
    best = 8
    cand = 8
    while cand <= min(64, N // 2):
        if N % cand == 0:
            best = cand
        cand += 8
    return best


def _fused_msc_kernel(starts_ref, lengths_ref,        # scalar prefetch (SMEM, (S,))
                      x_ref, w_ref, b_ref,            # VMEM inputs
                      out_ref,                        # VMEM output (S+1, n_blk, Kp)
                      acc_ref,                        # VMEM scratch (S, n_blk, C) f32
                      *, is_full):
    """Fused multi-scale global-avg-pool + linear + elementwise max.

    Grid = (N_tiles, T_tiles); T (reduction) axis is last / "arbitrary".
    x block: (n_blk, C, t_blk, HW) with HW on the 128-lane axis.
    """
    tb = pl.program_id(1)
    num_tb = pl.num_programs(1)
    S = acc_ref.shape[0]
    _n, C, t_blk, hw = x_ref.shape

    @pl.when(tb == 0)
    def _init():
        acc_ref[...] = jnp.zeros_like(acc_ref)

    # Spatial (HW) reduction done once, shared by every scale:
    # (n_blk, C, t_blk, HW) -> (n_blk, C, t_blk).  Always accumulated in f32.
    per_frame = jnp.sum(x_ref[...].astype(jnp.float32), axis=3)

    # Frame indices covered by this T tile.
    frame0 = tb * t_blk
    fidx = frame0 + lax.broadcasted_iota(jnp.int32, (1, 1, t_blk), 2)

    for s in range(S):
        if is_full[s]:
            # scale == 1.0: window is exactly [0, T) and T % t_blk == 0.
            acc_ref[s] = acc_ref[s] + jnp.sum(per_frame, axis=2)
        else:
            lo = starts_ref[s]
            hi = lo + lengths_ref[s]

            # Skip tiles that do not overlap this scale's crop window.
            @pl.when(jnp.logical_and(hi > frame0, lo < frame0 + t_blk))
            def _acc(s=s, lo=lo, hi=hi):
                m = jnp.logical_and(fidx >= lo, fidx < hi)
                # jnp.where (select), not multiply: out-of-window inf/NaN
                # frames can never poison the accumulator.
                acc_ref[s] = acc_ref[s] + jnp.sum(
                    jnp.where(m, per_frame, 0.0), axis=2)

    @pl.when(tb == num_tb - 1)
    def _finalize():
        w = w_ref[...]                                     # (C, Kp)
        b = b_ref[...]                                     # (1, Kp)
        mx = None
        for s in range(S):
            # Normalize by the FULL crop length (len_s * HW), never per tile.
            inv = 1.0 / (lengths_ref[s].astype(jnp.float32) * hw)
            pooled = acc_ref[s] * inv                      # (n_blk, C) f32
            if C % _SUBLANE == 0:
                logits = jnp.dot(pooled, w,
                                 preferred_element_type=jnp.float32) + b
            else:
                # Tiny / non-aligned C: unrolled VPU multiply-add, full f32.
                logits = b + pooled[:, 0:1] * w[0:1, :]
                for c in range(1, C):
                    logits = logits + pooled[:, c:c + 1] * w[c:c + 1, :]
            out_ref[s] = logits
            mx = logits if mx is None else jnp.maximum(mx, logits)
        out_ref[S] = mx


@functools.partial(jax.jit, static_argnames=("is_full", "compute_dtype"))
def _msc_head(x, w, b, starts, lengths, *, is_full, compute_dtype):
    N, C, T, H, W = x.shape
    K = w.shape[1]
    S = len(is_full)
    HW = H * W
    Kp = _round_up(K, _LANE)
    cdt = compute_dtype                                   # np.dtype (static)

    # (H, W) -> HW merge is layout preserving; optional bf16 cast fuses here.
    # The streamed activation is never channel- or lane-padded.
    x_r = x.reshape(N, C, T, HW).astype(cdt)

    # Pad only the tiny weight / bias so the MXU matmul and output stores are
    # lane-dense (no-op when K is already a multiple of 128).
    w_p = jnp.pad(w.astype(jnp.float32), ((0, 0), (0, Kp - K)))
    b_p = jnp.pad(b.astype(jnp.float32).reshape(1, K), ((0, 0), (0, Kp - K)))

    # ---- block sizing ----------------------------------------------------
    n_blk = _pick_n_blk(N)
    hw_pad = _round_up(HW, _LANE)                         # VMEM lane padding
    vmem_limit = _vmem_limit_bytes()
    fixed = (2 * (C * Kp + Kp) * 4                        # w, b (double-buffered)
             + 2 * (S + 1) * n_blk * Kp * 4               # resident output
             + S * n_blk * C * 4                          # accumulator scratch
             + (1 << 20))                                 # margin
    budget = max(1 << 20, (vmem_limit - fixed) // 2)      # per input buffer (x2)
    cdt_size = np.dtype(cdt).itemsize
    granule = 8 if cdt_size >= 4 else 16                  # sublane packing of T
    bytes_per_granule = n_blk * C * hw_pad * granule * cdt_size
    t_max = max(granule, budget // bytes_per_granule * granule)

    if t_max >= _round_up(T, granule):
        t_blk, T_pad = T, T                               # whole T in one block
    else:
        # Prefer a multiple-of-8 divisor of T (no extra T-pad pass over x).
        t_blk = 0
        d = (t_max // _SUBLANE) * _SUBLANE
        while d >= _SUBLANE:
            if T % d == 0:
                t_blk = d
                break
            d -= _SUBLANE
        if t_blk == 0:
            t_blk = max(_SUBLANE, (t_max // _SUBLANE) * _SUBLANE)
        T_pad = _round_up(T, t_blk)

    if T_pad != T:
        x_r = jnp.pad(x_r, ((0, 0), (0, 0), (0, T_pad - T), (0, 0)))
        # Padded frames are zero, but keep every scale masked for safety.
        is_full = tuple(False for _ in is_full)

    grid = (N // n_blk, T_pad // t_blk)

    out = pl.pallas_call(
        functools.partial(_fused_msc_kernel, is_full=is_full),
        out_shape=jax.ShapeDtypeStruct((S + 1, N, Kp), jnp.float32),
        grid_spec=pltpu.PrefetchScalarGridSpec(
            num_scalar_prefetch=2,
            grid=grid,
            in_specs=[
                pl.BlockSpec((n_blk, C, t_blk, HW),
                             lambda n, t, st, ln: (n, 0, t, 0)),
                pl.BlockSpec((C, Kp), lambda n, t, st, ln: (0, 0)),
                pl.BlockSpec((1, Kp), lambda n, t, st, ln: (0, 0)),
            ],
            out_specs=pl.BlockSpec((S + 1, n_blk, Kp),
                                   lambda n, t, st, ln: (0, n, 0)),
            scratch_shapes=[pltpu.VMEM((S, n_blk, C), jnp.float32)],
        ),
        compiler_params=pltpu.CompilerParams(
            dimension_semantics=("parallel", "arbitrary"),
            vmem_limit_bytes=vmem_limit,
        ),
    )(starts, lengths, x_r, w_p, b_p)

    return out[:, :, :K]


def temporal_msc_head(x, w, b, starts, lengths, compute_dtype=None):
    """Fused multi-scale (pool + linear + max) head.

    x:       (N, C, T, H, W)
    w:       (C, K) weight, b: (1, K) bias
    starts:  length-S sequence of crop start frames (python ints)
    lengths: length-S sequence of crop lengths (python ints, >= 1)
    Returns: (S + 1, N, K) -- per-scale logits followed by their element-wise max.
    """
    T = x.shape[2]
    starts = [int(s) for s in starts]
    lengths = [int(l) for l in lengths]
    assert all(l >= 1 for l in lengths), "crop length must be >= 1"
    assert all(0 <= st and st + l <= T for st, l in zip(starts, lengths))
    is_full = tuple(st == 0 and l == T for st, l in zip(starts, lengths))
    cdt = jax.dtypes.canonicalize_dtype(
        compute_dtype if compute_dtype is not None else x.dtype)
    return _msc_head(x, w, b,
                     jnp.asarray(starts, jnp.int32),
                     jnp.asarray(lengths, jnp.int32),
                     is_full=is_full, compute_dtype=cdt)


class TemporalMSC:
    """Temporal multi-scale inputs (e.g. 64f, 32f, 16f) — JAX/Pallas port.

    The `base` network is synthesized as GAP(T,H,W) + Linear(C, K) and fused
    with the multi-scale cropping and the element-wise max into one kernel.
    """

    def __init__(self, w, b, scales=(1.0, 0.5), val_msc=False, seed=0,
                 compute_dtype=None):
        self.w = w
        self.b = b
        self.scales = list(scales)
        self.val_msc = val_msc
        self.training = True
        self.compute_dtype = compute_dtype
        # deterministic replacement for np.random.randint in the torch module
        self._rng = np.random.RandomState(seed)

    def __call__(self, x):
        _, _, T, _, _ = x.shape
        if self.training or self.val_msc:
            starts, lengths = [], []
            for s in self.scales:
                nf = max(1, int(s * T))
                if s == 1.0:
                    starts.append(0)
                else:
                    starts.append(int(self._rng.randint(0, T - nf + 1)))
                lengths.append(nf)
            out = temporal_msc_head(x, self.w, self.b, starts, lengths,
                                    compute_dtype=self.compute_dtype)
            per_scale = [out[i] for i in range(len(self.scales))]
            max_logits = out[len(self.scales)]
            if self.training:
                return per_scale + [max_logits]
            return max_logits
        # eval without MSC: plain base(x) == single full-length "crop".
        return temporal_msc_head(x, self.w, self.b, [0], [T],
                                 compute_dtype=self.compute_dtype)[0]


if __name__ == "__main__":
    # Small shapes consistent with an NCTHW video input.
    N, C, T, H, W = 2, 4, 8, 16, 16
    K = 32  # num_classes

    key = jax.random.PRNGKey(0)
    kx, kw, kb = jax.random.split(key, 3)
    x = jax.random.normal(kx, (N, C, T, H, W), dtype=jnp.float32)
    w = jax.random.normal(kw, (C, K), dtype=jnp.float32) * 0.1
    b = jax.random.normal(kb, (1, K), dtype=jnp.float32) * 0.01

    msc = TemporalMSC(w, b, scales=[1.0, 0.5], val_msc=True, seed=0)
    msc.training = True

    outs = msc(x)                      # [logits_s1.0, logits_s0.5, max_logits]
    outs = [jax.block_until_ready(o) for o in outs]

    # Pure-JAX reference of the same math (same RNG draw order as the module).
    rng_ref = np.random.RandomState(0)

    def ref_base(x5d):
        pooled = jnp.mean(x5d.reshape(x5d.shape[0], x5d.shape[1], -1), axis=-1)
        return jnp.dot(pooled, w, precision=lax.Precision.HIGHEST) + b

    ref_logits = []
    for s in [1.0, 0.5]:
        if s == 1.0:
            ref_logits.append(ref_base(x))
        else:
            nf = int(s * T)
            start = int(rng_ref.randint(0, T - nf + 1))
            ref_logits.append(ref_base(x[:, :, start:start + nf]))
    ref_all = ref_logits + [jnp.max(jnp.stack(ref_logits, axis=0), axis=0)]

    for got, want in zip(outs, ref_all):
        np.testing.assert_allclose(np.asarray(got), np.asarray(want),
                                   rtol=1e-4, atol=5e-5)

    # Also exercise the eval (non-MSC) path once.
    msc.training = False
    msc.val_msc = False
    eval_logits = jax.block_until_ready(msc(x))
    np.testing.assert_allclose(np.asarray(eval_logits),
                               np.asarray(ref_logits[0]),
                               rtol=1e-4, atol=5e-5)

    # bf16 streaming path (half the HBM read traffic); f32 accumulation.
    bf_out = jax.block_until_ready(
        temporal_msc_head(x, w, b, [0], [T], compute_dtype=jnp.bfloat16))[0]
    np.testing.assert_allclose(np.asarray(bf_out), np.asarray(ref_logits[0]),
                               rtol=3e-2, atol=3e-2)

    print("KERNEL_OK")
</pallas_src>

<mosaic_0001>
module attributes {stable_mosaic.version = 11 : i64} {
  func.func @_fused_msc_kernel(%arg0: i32, %arg1: i32, %arg2: memref<2xi32, #tpu.memory_space<smem>>, %arg3: memref<2xi32, #tpu.memory_space<smem>>, %arg4: memref<2x4x8x256xf32, #tpu.memory_space<vmem>>, %arg5: memref<4x128xf32, #tpu.memory_space<vmem>>, %arg6: memref<1x128xf32, #tpu.memory_space<vmem>>, %arg7: memref<3x2x128xf32, #tpu.memory_space<vmem>>, %arg8: memref<2x2x4xf32, #tpu.memory_space<vmem>>) attributes {dimension_semantics = [#tpu.dimension_semantics<parallel>, #tpu.dimension_semantics<arbitrary>], iteration_bounds = array<i64: 1, 1>, scalar_prefetch = 2 : i64, scratch_operands = 1 : i64, tpu.core_type = #tpu.core_type<tc>, window_params = [{transform_indices = @transform_0, window_bounds = array<i64: 2, 4, 8, 256>}, {pipeline_mode = #tpu.pipeline_mode<synchronous>, transform_indices = @transform_1, window_bounds = array<i64: 4, 128>}, {pipeline_mode = #tpu.pipeline_mode<synchronous>, transform_indices = @transform_2, window_bounds = array<i64: 1, 128>}, {transform_indices = @transform_3, window_bounds = array<i64: 3, 2, 128>}]} {
    %c0_i32 = arith.constant 0 : i32
    %0 = arith.cmpi eq, %arg1, %c0_i32 : i32
    %1 = arith.extui %0 : i1 to i32
    %c0_i32_0 = arith.constant 0 : i32
    %2 = arith.cmpi ne, %1, %c0_i32_0 : i32
    scf.if %2 {
      %cst_16 = arith.constant 0.000000e+00 : f32
      %28 = vector.broadcast %cst_16 : f32 to vector<2x2x4xf32>
      %c0_17 = arith.constant 0 : index
      %c0_18 = arith.constant 0 : index
      %c0_19 = arith.constant 0 : index
      %29 = vector.load %arg8[%c0_17, %c0_18, %c0_19] : memref<2x2x4xf32, #tpu.memory_space<vmem>>, vector<2x2x4xf32>
      tpu.vector_store %arg8[%c0_17, %c0_18, %c0_19], %28 {strides = array<i32>} : memref<2x2x4xf32, #tpu.memory_space<vmem>>, vector<2x2x4xf32>,
    } else {
    }
    %c0 = arith.constant 0 : index
    %c0_1 = arith.constant 0 : index
    %c0_2 = arith.constant 0 : index
    %c0_3 = arith.constant 0 : index
    %3 = vector.load %arg4[%c0, %c0_1, %c0_2, %c0_3] : memref<2x4x8x256xf32, #tpu.memory_space<vmem>>, vector<2x4x8x256xf32>
    %cst = arith.constant dense<0.000000e+00> : vector<2x4x8xf32>
    %4 = vector.multi_reduction <add>, %3, %cst [3] : vector<2x4x8x256xf32> to vector<2x4x8xf32>
    %c8_i32 = arith.constant 8 : i32
    %5 = arith.muli %arg1, %c8_i32 : i32
    %6 = tpu.iota {dimensions = array<i32: 2>} : vector<1x1x8xi32>
    %7 = vector.broadcast %5 : i32 to vector<1x1x8xi32>
    %8 = arith.addi %7, %6 : vector<1x1x8xi32>
    %c0_4 = arith.constant 0 : index
    %c0_5 = arith.constant 0 : index
    %c0_6 = arith.constant 0 : index
    %9 = vector.load %arg8[%c0_4, %c0_5, %c0_6] : memref<2x2x4xf32, #tpu.memory_space<vmem>>, vector<1x2x4xf32>
    %10 = vector.shape_cast %9 : vector<1x2x4xf32> to vector<2x4xf32>
    %cst_7 = arith.constant dense<0.000000e+00> : vector<2x4xf32>
    %11 = vector.multi_reduction <add>, %4, %cst_7 [2] : vector<2x4x8xf32> to vector<2x4xf32>
    %12 = arith.addf %10, %11 : vector<2x4xf32>
    %c0_8 = arith.constant 0 : index
    %c0_9 = arith.constant 0 : index
    %c0_10 = arith.constant 0 : index
    %13 = vector.load %arg8[%c0_8, %c0_9, %c0_10] : memref<2x2x4xf32, #tpu.memory_space<vmem>>, vector<1x2x4xf32>
    %14 = vector.shape_cast %13 : vector<1x2x4xf32> to vector<2x4xf32>
    %15 = vector.shape_cast %12 : vector<2x4xf32> to vector<1x2x4xf32>
    tpu.vector_store %arg8[%c0_8, %c0_9, %c0_10], %15 {strides = array<i32>} : memref<2x2x4xf32, #tpu.memory_space<vmem>>, vector<1x2x4xf32>,
    %c1 = arith.constant 1 : index
    %16 = memref.load %arg2[%c1] : memref<2xi32, #tpu.memory_space<smem>>
    %c1_11 = arith.constant 1 : index
    %17 = memref.load %arg3[%c1_11] : memref<2xi32, #tpu.memory_space<smem>>
    %18 = arith.addi %16, %17 : i32
    %19 = arith.cmpi sgt, %18, %5 : i32
    %c8_i32_12 = arith.constant 8 : i32
    %20 = arith.addi %5, %c8_i32_12 : i32
    %21 = arith.cmpi slt, %16, %20 : i32
    %22 = arith.andi %19, %21 : i1
    %23 = arith.extui %22 : i1 to i32
    %c0_i32_13 = arith.constant 0 : i32
    %24 = arith.cmpi ne, %23, %c0_i32_13 : i32
    scf.if %24 {
      %28 = vector.broadcast %16 : i32 to vector<1x1x8xi32>
      %29 = arith.cmpi sge, %8, %28 : vector<1x1x8xi32>
      %30 = vector.broadcast %18 : i32 to vector<1x1x8xi32>
      %31 = arith.cmpi slt, %8, %30 : vector<1x1x8xi32>
      %32 = arith.andi %29, %31 : vector<1x1x8xi1>
      %c1_16 = arith.constant 1 : index
      %c0_17 = arith.constant 0 : index
      %c0_18 = arith.constant 0 : index
      %33 = vector.load %arg8[%c1_16, %c0_17, %c0_18] : memref<2x2x4xf32, #tpu.memory_space<vmem>>, vector<1x2x4xf32>
      %34 = vector.shape_cast %33 : vector<1x2x4xf32> to vector<2x4xf32>
      %cst_19 = arith.constant 0.000000e+00 : f32
      %35 = vector.shape_cast %32 : vector<1x1x8xi1> to vector<1x1x8xi1>
      %36 = vector.broadcast %35 : vector<1x1x8xi1> to vector<2x4x8xi1>
      %37 = vector.broadcast %cst_19 : f32 to vector<2x4x8xf32>
      %38 = arith.select %36, %4, %37 : vector<2x4x8xi1>, vector<2x4x8xf32>
      %cst_20 = arith.constant dense<0.000000e+00> : vector<2x4xf32>
      %39 = vector.multi_reduction <add>, %38, %cst_20 [2] : vector<2x4x8xf32> to vector<2x4xf32>
      %40 = arith.addf %34, %39 : vector<2x4xf32>
      %c1_21 = arith.constant 1 : index
      %c0_22 = arith.constant 0 : index
      %c0_23 = arith.constant 0 : index
      %41 = vector.load %arg8[%c1_21, %c0_22, %c0_23] : memref<2x2x4xf32, #tpu.memory_space<vmem>>, vector<1x2x4xf32>
      %42 = vector.shape_cast %41 : vector<1x2x4xf32> to vector<2x4xf32>
      %43 = vector.shape_cast %40 : vector<2x4xf32> to vector<1x2x4xf32>
      tpu.vector_store %arg8[%c1_21, %c0_22, %c0_23], %43 {strides = array<i32>} : memref<2x2x4xf32, #tpu.memory_space<vmem>>, vector<1x2x4xf32>,
    } else {
    }
    %c0_i32_14 = arith.constant 0 : i32
    %25 = arith.cmpi eq, %arg1, %c0_i32_14 : i32
    %26 = arith.extui %25 : i1 to i32
    %c0_i32_15 = arith.constant 0 : i32
    %27 = arith.cmpi ne, %26, %c0_i32_15 : i32
    scf.if %27 {
      %c0_16 = arith.constant 0 : index
      %c0_17 = arith.constant 0 : index
      %28 = vector.load %arg5[%c0_16, %c0_17] : memref<4x128xf32, #tpu.memory_space<vmem>>, vector<4x128xf32>
      %c0_18 = arith.constant 0 : index
      %c0_19 = arith.constant 0 : index
      %29 = vector.load %arg6[%c0_18, %c0_19] : memref<1x128xf32, #tpu.memory_space<vmem>>, vector<1x128xf32>
      %c0_20 = arith.constant 0 : index
      %30 = memref.load %arg3[%c0_20] : memref<2xi32, #tpu.memory_space<smem>>
      %31 = arith.sitofp %30 : i32 to f32
      %cst_21 = arith.constant 2.560000e+02 : f32
      %32 = arith.mulf %31, %cst_21 : f32
      %cst_22 = arith.constant 1.000000e+00 : f32
      %33 = arith.divf %cst_22, %32 : f32
      %c0_23 = arith.constant 0 : index
      %c0_24 = arith.constant 0 : index
      %c0_25 = arith.constant 0 : index
      %34 = vector.load %arg8[%c0_23, %c0_24, %c0_25] : memref<2x2x4xf32, #tpu.memory_space<vmem>>, vector<1x2x4xf32>
      %35 = vector.shape_cast %34 : vector<1x2x4xf32> to vector<2x4xf32>
      %36 = vector.broadcast %33 : f32 to vector<2x4xf32>
      %37 = arith.mulf %35, %36 : vector<2x4xf32>
      %38 = vector.extract_strided_slice %37 {offsets = [0, 0], sizes = [2, 1], strides = [1, 1]} : vector<2x4xf32> to vector<2x1xf32>
      %39 = vector.extract_strided_slice %28 {offsets = [0, 0], sizes = [1, 128], strides = [1, 1]} : vector<4x128xf32> to vector<1x128xf32>
      %40 = vector.broadcast %38 : vector<2x1xf32> to vector<2x128xf32>
      %41 = vector.broadcast %39 : vector<1x128xf32> to vector<2x128xf32>
      %42 = arith.mulf %40, %41 : vector<2x128xf32>
      %43 = vector.broadcast %29 : vector<1x128xf32> to vector<2x128xf32>
      %44 = arith.addf %43, %42 : vector<2x128xf32>
      %45 = vector.extract_strided_slice %37 {offsets = [0, 1], sizes = [2, 1], strides = [1, 1]} : vector<2x4xf32> to vector<2x1xf32>
      %46 = vector.extract_strided_slice %28 {offsets = [1, 0], sizes = [1, 128], strides = [1, 1]} : vector<4x128xf32> to vector<1x128xf32>
      %47 = vector.broadcast %45 : vector<2x1xf32> to vector<2x128xf32>
      %48 = vector.broadcast %46 : vector<1x128xf32> to vector<2x128xf32>
      %49 = arith.mulf %47, %48 : vector<2x128xf32>
      %50 = arith.addf %44, %49 : vector<2x128xf32>
      %51 = vector.extract_strided_slice %37 {offsets = [0, 2], sizes = [2, 1], strides = [1, 1]} : vector<2x4xf32> to vector<2x1xf32>
      %52 = vector.extract_strided_slice %28 {offsets = [2, 0], sizes = [1, 128], strides = [1, 1]} : vector<4x128xf32> to vector<1x128xf32>
      %53 = vector.broadcast %51 : vector<2x1xf32> to vector<2x128xf32>
      %54 = vector.broadcast %52 : vector<1x128xf32> to vector<2x128xf32>
      %55 = arith.mulf %53, %54 : vector<2x128xf32>
      %56 = arith.addf %50, %55 : vector<2x128xf32>
      %57 = vector.extract_strided_slice %37 {offsets = [0, 3], sizes = [2, 1], strides = [1, 1]} : vector<2x4xf32> to vector<2x1xf32>
      %58 = vector.extract_strided_slice %28 {offsets = [3, 0], sizes = [1, 128], strides = [1, 1]} : vector<4x128xf32> to vector<1x128xf32>
      %59 = vector.broadcast %57 : vector<2x1xf32> to vector<2x128xf32>
      %60 = vector.broadcast %58 : vector<1x128xf32> to vector<2x128xf32>
      %61 = arith.mulf %59, %60 : vector<2x128xf32>
      %62 = arith.addf %56, %61 : vector<2x128xf32>
      %c0_26 = arith.constant 0 : index
      %c0_27 = arith.constant 0 : index
      %c0_28 = arith.constant 0 : index
      %63 = vector.load %arg7[%c0_26, %c0_27, %c0_28] : memref<3x2x128xf32, #tpu.memory_space<vmem>>, vector<1x2x128xf32>
      %64 = vector.shape_cast %63 : vector<1x2x128xf32> to vector<2x128xf32>
      %65 = vector.shape_cast %62 : vector<2x128xf32> to vector<1x2x128xf32>
      tpu.vector_store %arg7[%c0_26, %c0_27, %c0_28], %65 {strides = array<i32>} : memref<3x2x128xf32, #tpu.memory_space<vmem>>, vector<1x2x128xf32>,
      %c1_29 = arith.constant 1 : index
      %66 = memref.load %arg3[%c1_29] : memref<2xi32, #tpu.memory_space<smem>>
      %67 = arith.sitofp %66 : i32 to f32
      %cst_30 = arith.constant 2.560000e+02 : f32
      %68 = arith.mulf %67, %cst_30 : f32
      %cst_31 = arith.constant 1.000000e+00 : f32
      %69 = arith.divf %cst_31, %68 : f32
      %c1_32 = arith.constant 1 : index
      %c0_33 = arith.constant 0 : index
      %c0_34 = arith.constant 0 : index
      %70 = vector.load %arg8[%c1_32, %c0_33, %c0_34] : memref<2x2x4xf32, #tpu.memory_space<vmem>>, vector<1x2x4xf32>
      %71 = vector.shape_cast %70 : vector<1x2x4xf32> to vector<2x4xf32>
      %72 = vector.broadcast %69 : f32 to vector<2x4xf32>
      %73 = arith.mulf %71, %72 : vector<2x4xf32>
      %74 = vector.extract_strided_slice %73 {offsets = [0, 0], sizes = [2, 1], strides = [1, 1]} : vector<2x4xf32> to vector<2x1xf32>
      %75 = vector.extract_strided_slice %28 {offsets = [0, 0], sizes = [1, 128], strides = [1, 1]} : vector<4x128xf32> to vector<1x128xf32>
      %76 = vector.broadcast %74 : vector<2x1xf32> to vector<2x128xf32>
      %77 = vector.broadcast %75 : vector<1x128xf32> to vector<2x128xf32>
      %78 = arith.mulf %76, %77 : vector<2x128xf32>
      %79 = vector.broadcast %29 : vector<1x128xf32> to vector<2x128xf32>
      %80 = arith.addf %79, %78 : vector<2x128xf32>
      %81 = vector.extract_strided_slice %73 {offsets = [0, 1], sizes = [2, 1], strides = [1, 1]} : vector<2x4xf32> to vector<2x1xf32>
      %82 = vector.extract_strided_slice %28 {offsets = [1, 0], sizes = [1, 128], strides = [1, 1]} : vector<4x128xf32> to vector<1x128xf32>
      %83 = vector.broadcast %81 : vector<2x1xf32> to vector<2x128xf32>
      %84 = vector.broadcast %82 : vector<1x128xf32> to vector<2x128xf32>
      %85 = arith.mulf %83, %84 : vector<2x128xf32>
      %86 = arith.addf %80, %85 : vector<2x128xf32>
      %87 = vector.extract_strided_slice %73 {offsets = [0, 2], sizes = [2, 1], strides = [1, 1]} : vector<2x4xf32> to vector<2x1xf32>
      %88 = vector.extract_strided_slice %28 {offsets = [2, 0], sizes = [1, 128], strides = [1, 1]} : vector<4x128xf32> to vector<1x128xf32>
      %89 = vector.broadcast %87 : vector<2x1xf32> to vector<2x128xf32>
      %90 = vector.broadcast %88 : vector<1x128xf32> to vector<2x128xf32>
      %91 = arith.mulf %89, %90 : vector<2x128xf32>
      %92 = arith.addf %86, %91 : vector<2x128xf32>
      %93 = vector.extract_strided_slice %73 {offsets = [0, 3], sizes = [2, 1], strides = [1, 1]} : vector<2x4xf32> to vector<2x1xf32>
      %94 = vector.extract_strided_slice %28 {offsets = [3, 0], sizes = [1, 128], strides = [1, 1]} : vector<4x128xf32> to vector<1x128xf32>
      %95 = vector.broadcast %93 : vector<2x1xf32> to vector<2x128xf32>
      %96 = vector.broadcast %94 : vector<1x128xf32> to vector<2x128xf32>
      %97 = arith.mulf %95, %96 : vector<2x128xf32>
      %98 = arith.addf %92, %97 : vector<2x128xf32>
      %c1_35 = arith.constant 1 : index
      %c0_36 = arith.constant 0 : index
      %c0_37 = arith.constant 0 : index
      %99 = vector.load %arg7[%c1_35, %c0_36, %c0_37] : memref<3x2x128xf32, #tpu.memory_space<vmem>>, vector<1x2x128xf32>
      %100 = vector.shape_cast %99 : vector<1x2x128xf32> to vector<2x128xf32>
      %101 = vector.shape_cast %98 : vector<2x128xf32> to vector<1x2x128xf32>
      tpu.vector_store %arg7[%c1_35, %c0_36, %c0_37], %101 {strides = array<i32>} : memref<3x2x128xf32, #tpu.memory_space<vmem>>, vector<1x2x128xf32>,
      %102 = arith.maximumf %62, %98 : vector<2x128xf32>
      %c2 = arith.constant 2 : index
      %c0_38 = arith.constant 0 : index
      %c0_39 = arith.constant 0 : index
      %103 = vector.load %arg7[%c2, %c0_38, %c0_39] : memref<3x2x128xf32, #tpu.memory_space<vmem>>, vector<1x2x128xf32>
      %104 = vector.shape_cast %103 : vector<1x2x128xf32> to vector<2x128xf32>
      %105 = vector.shape_cast %102 : vector<2x128xf32> to vector<1x2x128xf32>
      tpu.vector_store %arg7[%c2, %c0_38, %c0_39], %105 {strides = array<i32>} : memref<3x2x128xf32, #tpu.memory_space<vmem>>, vector<1x2x128xf32>,
    } else {
    }
    return
  }
  func.func @transform_0(%arg0: i32, %arg1: i32, %arg2: memref<2xi32, #tpu.memory_space<smem>>, %arg3: memref<2xi32, #tpu.memory_space<smem>>) -> (i32, i32, i32, i32) {
    %c0_i32 = arith.constant 0 : i32
    %c0_i32_0 = arith.constant 0 : i32
    %c0_i32_1 = arith.constant 0 : i32
    return %arg0, %c0_i32, %arg1, %c0_i32_0 : i32, i32, i32, i32
  }
  func.func @transform_1(%arg0: i32, %arg1: i32, %arg2: memref<2xi32, #tpu.memory_space<smem>>, %arg3: memref<2xi32, #tpu.memory_space<smem>>) -> (i32, i32) {
    %c0_i32 = arith.constant 0 : i32
    %c0_i32_0 = arith.constant 0 : i32
    %c0_i32_1 = arith.constant 0 : i32
    return %c0_i32, %c0_i32_0 : i32, i32
  }
  func.func @transform_2(%arg0: i32, %arg1: i32, %arg2: memref<2xi32, #tpu.memory_space<smem>>, %arg3: memref<2xi32, #tpu.memory_space<smem>>) -> (i32, i32) {
    %c0_i32 = arith.constant 0 : i32
    %c0_i32_0 = arith.constant 0 : i32
    %c0_i32_1 = arith.constant 0 : i32
    return %c0_i32, %c0_i32_0 : i32, i32
  }
  func.func @transform_3(%arg0: i32, %arg1: i32, %arg2: memref<2xi32, #tpu.memory_space<smem>>, %arg3: memref<2xi32, #tpu.memory_space<smem>>) -> (i32, i32, i32) {
    %c0_i32 = arith.constant 0 : i32
    %c0_i32_0 = arith.constant 0 : i32
    %c0_i32_1 = arith.constant 0 : i32
    return %c0_i32, %arg0, %c0_i32_0 : i32, i32, i32
  }
}

</mosaic_0001>

<llo_original>
// kernel: _msc_head.1
$region0: #{_msc_head.1}
  #allocation0 [shape = 'u32[]', space=smem, size = 0x4, offset = 0x4, fixed_abs, tag = 'smem constant byte address 0x4 - core index']
  #allocation1 [shape = 'u32[72,128]{1,0:T(1,128)}', space=vmem, size = 0x9000, scoped, tag = 'internal scratch']
  #allocation2 [shape = 'f32[2,2,4]{2,1,0:T(2,128)}', space=vmem, size = 0x800, scoped, tag = 'scratch operand']
  #allocation3 [shape = 's32[1]{0}', space=sflag, size = 0x4, scoped, tag = 'scoped memory for _msc_head.1']
  #allocation4 [shape = 'u8[512]{0}', space=smem, size = 0x200, scoped, tag = 'prefetched SMEM operand 0']
  #allocation5 [shape = 'u8[512]{0}', space=smem, size = 0x200, scoped, tag = 'prefetched SMEM operand 1']
  %s0 = inlined_call_operand.vmem [shape: s32[2], index: 0, kind: input, shape index: {}]
  %s1 = inlined_call_operand.vmem [shape: s32[2], index: 1, kind: input, shape index: {}]
  %s2 = inlined_call_operand.vmem [shape: f32[2,4,8,256], index: 2, kind: input, shape index: {}]
  %s3 = inlined_call_operand.vmem [shape: f32[4,128], index: 3, kind: input, shape index: {}]
  %s4 = inlined_call_operand.vmem [shape: f32[1,128], index: 4, kind: input, shape index: {}]
  %s5 = inlined_call_operand.hbm [shape: f32[3,2,128], index: 5, kind: output, shape index: {}]
  %s6 = sld [smem:[#allocation0]]
  $region34: #{_msc_head.1} parent=0
    _
  %s8 = ssub.s32 1, %s6
  %s9 = scalar_select 0, %s8, %s6
  %s11 = sshll.u32 %s0, 4
  %s12 = int_to_ptr.vmem [resolvable:$true] %s11
  %14 = dma.vmem_to_smem %s12, 16, [#allocation4], [#allocation3]
  %s16 = sshll.u32 %s1, 4
  %s17 = int_to_ptr.vmem [resolvable:$true] %s16
  %19 = dma.vmem_to_smem %s17, 16, [#allocation5], [#allocation3]
  %21 = dma.done [#allocation3], 32
  %22 = sfence
  $region1: #{_msc_head.1} parent=0
    #allocation6 [shape = 'u8[3072]{0}', space=vmem, size = 0xc00, scoped, tag = 'output window, operand 0, single buffered']
    #allocation7 [shape = 's32[1]{0}', space=sflag, size = 0x4, scoped, tag = 'scoped memory for _msc_head.1']
    %23 = vsyncpa [#allocation7], 0
    // Predicated region
    $region2: #{_msc_head.1} parent=1 // pred_check
      _
    $region3: #{_msc_head.1} parent=1 // pred_check_branch
      %25 = sbr.rel (0) target = $region5
    $region4: #{_msc_head.1} parent=1 // pred_region
      _
    $region5: #{_msc_head.1} parent=1 // pred_fallthru
      _
    // Predicated region
    $region6: #{_msc_head.1} parent=1 // pred_check
      _
    $region7: #{_msc_head.1} parent=1 // pred_check_branch
      %27 = sbr.rel (0) target = $region9
    $region8: #{_msc_head.1} parent=1 // pred_region
      _
    $region9: #{_msc_head.1} parent=1 // pred_fallthru
      _
    // Predicated region
    $region10: #{_msc_head.1} parent=1 // pred_check
      _
    $region11: #{_msc_head.1} parent=1 // pred_check_branch
      %29 = sbr.rel (0) target = $region13
    $region12: #{_msc_head.1} parent=1 // pred_region
      _
    $region13: #{_msc_head.1} parent=1 // pred_fallthru
      _
    %p30 = scmp.eq.s32.totalorder 0, 0
    // Predicated region
    $region14: #{_msc_head.1} parent=1 // pred_check
      %p31 = pneg %p30
    $region15: #{_msc_head.1} parent=1 // pred_check_branch
      %33 = sbr.rel (%p31) target = $region17
    $region16: #{_msc_head.1} parent=1 // pred_region
      %vm34 = vcmask 25600
      %35 = vst.msk [vmem:[#allocation2] sm:$0x3] %vm34, 0.0
      %36 = vst.msk [vmem:[#allocation2 + $0x2] sm:$0x3] %vm34, 0.0
    $region17: #{_msc_head.1} parent=1 // pred_fallthru
      _
    %v37 = vld [vmem:[%s2] sm:$0xff]
    %v38 = vld [vmem:[%s2 + $0x8] sm:$0xff]
    %v39 = vld [vmem:[%s2 + $0x10] sm:$0xff]
    %v40 = vld [vmem:[%s2 + $0x18] sm:$0xff]
    %v41 = vld [vmem:[%s2 + $0x20] sm:$0xff]
    %v42 = vld [vmem:[%s2 + $0x28] sm:$0xff]
    %v43 = vld [vmem:[%s2 + $0x30] sm:$0xff]
    %v44 = vld [vmem:[%s2 + $0x38] sm:$0xff]
    %v45 = vld [vmem:[%s2 + $0x40] sm:$0xff]
    %v46 = vld [vmem:[%s2 + $0x48] sm:$0xff]
    %v47 = vld [vmem:[%s2 + $0x50] sm:$0xff]
    %v48 = vld [vmem:[%s2 + $0x58] sm:$0xff]
    %v49 = vld [vmem:[%s2 + $0x60] sm:$0xff]
    %v50 = vld [vmem:[%s2 + $0x68] sm:$0xff]
    %v51 = vld [vmem:[%s2 + $0x70] sm:$0xff]
    %v52 = vld [vmem:[%s2 + $0x78] sm:$0xff]
    %v53 = vadd.f32 %v37, %v38
    %54 = vadd.xlane.f32.xlu0 %v53
    %v55 = vpop.xlane.xlu0 %54
    %v56 = vadd.f32 %v39, %v40
    %57 = vadd.xlane.f32.xlu0 %v56
    %v58 = vpop.xlane.xlu0 %57
    %v59 = vadd.f32 %v41, %v42
    %60 = vadd.xlane.f32.xlu0 %v59
    %v61 = vpop.xlane.xlu0 %60
    %v62 = vadd.f32 %v43, %v44
    %63 = vadd.xlane.f32.xlu0 %v62
    %v64 = vpop.xlane.xlu0 %63
    %v65 = vadd.f32 %v45, %v46
    %66 = vadd.xlane.f32.xlu0 %v65
    %v67 = vpop.xlane.xlu0 %66
    %v68 = vadd.f32 %v47, %v48
    %69 = vadd.xlane.f32.xlu0 %v68
    %v70 = vpop.xlane.xlu0 %69
    %v71 = vadd.f32 %v49, %v50
    %72 = vadd.xlane.f32.xlu0 %v71
    %v73 = vpop.xlane.xlu0 %72
    %v74 = vadd.f32 %v51, %v52
    %75 = vadd.xlane.f32.xlu0 %v74
    %v76 = vpop.xlane.xlu0 %75
    %s77 = smul.u32 0, 8
    %v78 = vlaneseq
    %v79 = vand.u32 %v78, 127
    %v80 = vstv %s77
    %v81 = vadd.s32 %v80, %v79
    %v82 = vld [vmem:[#allocation2] sm:$0x3]
    %v91 = vperm.slane %v55, %v79
    %v92 = vperm.slane %v58, %v79
    %v93 = vperm.slane %v61, %v79
    %v94 = vperm.slane %v64, %v79
    %v95 = vperm.slane %v67, %v79
    %v96 = vperm.slane %v70, %v79
    %v97 = vperm.slane %v73, %v79
    %v98 = vperm.slane %v76, %v79
    %vm99 = vcmask 1041409
    %v100 = vsel %vm99, %v92, %v91
    %vm101 = vcmask 1042434
    %v102 = vsel %vm101, %v93, %v100
    %vm103 = vcmask 1043459
    %v104 = vsel %vm103, %v94, %v102
    %v105 = vsel %vm99, %v96, %v95
    %v106 = vsel %vm101, %v97, %v105
    %v107 = vsel %vm103, %v98, %v106
    %vm110 = vcmask 60416
    %v111 = vsel %vm110, %v104, 0.0
    %112 = vadd.xlane.f32.xlu0 %v111
    %v113 = vpop.xlane.xlu0 %112
    %v114 = vsel %vm110, %v107, 0.0
    %115 = vadd.xlane.f32.xlu0 %v114
    %v116 = vpop.xlane.xlu0 %115
    %v119 = vperm.slane %v113, %v79
    %v120 = vperm.slane %v116, %v79
    %v121 = vsel %vm99, %v120, %v119
    %v123 = vadd.f32 %v82, %v121
    %vm124 = vcmask 25600
    %125 = vst.msk [vmem:[#allocation2] sm:$0x3] %vm124, %v123
    %s126 = sld [smem:[#allocation4 + $0x1]]
    %s127 = sld [smem:[#allocation5 + $0x1]]
    %s128 = sadd.s32 %s126, %s127
    %p129 = scmp.gt.s32.totalorder %s128, %s77
    %s130 = sadd.s32 %s77, 8
    %p131 = scmp.lt.s32.totalorder %s126, %s130
    %p132 = pnand %p129, %p131
    %p133 = pneg %p132
    // Predicated region
    $region18: #{_msc_head.1} parent=1 // pred_check
      _
    $region19: #{_msc_head.1} parent=1 // pred_check_branch
      %135 = sbr.rel (%p132) target = $region21
    $region20: #{_msc_head.1} parent=1 // pred_region
      %v136 = vstv %s126
      %vm137 = vcmp.ge.s32.totalorder %v81, %v136
      %v138 = vstv %s128
      %vm139 = vcmp.lt.s32.totalorder %v81, %v138
      %vm140 = vmand %vm137, %vm139
      %s141 = scalar_lea.vmem [#allocation2], 2
      %v142 = vld [vmem:[%s141] sm:$0x3]
      %v143 = vsel %vm140, 1, 0
      %vm144 = vcmp.eq.s32.totalorder %v143, 1
      %v145 = vsel %vm144, %v104, 0.0
      %v146 = vsel %vm144, %v107, 0.0
      %v147 = vsel %vm110, %v145, 0.0
      %148 = vadd.xlane.f32.xlu0 %v147
      %v149 = vpop.xlane.xlu0 %148
      %v150 = vsel %vm110, %v146, 0.0
      %151 = vadd.xlane.f32.xlu0 %v150
      %v152 = vpop.xlane.xlu0 %151
      %v155 = vperm.slane %v149, %v79
      %v156 = vperm.slane %v152, %v79
      %v157 = vsel %vm99, %v156, %v155
      %v159 = vadd.f32 %v142, %v157
      %160 = vst.msk [vmem:[%s141] sm:$0x3] %vm124, %v159
    $region21: #{_msc_head.1} parent=1 // pred_fallthru
      _
    // Predicated region
    $region22: #{_msc_head.1} parent=1 // pred_check
      %p161 = pneg %p30
    $region23: #{_msc_head.1} parent=1 // pred_check_branch
      %163 = sbr.rel (%p161) target = $region25
    $region24: #{_msc_head.1} parent=1 // pred_region
      %v164 = vld [vmem:[%s3] sm:$0xf]
      %v165 = vld [vmem:[%s4] sm:$0x1]
      %s166 = sld [smem:[#allocation5]]
      %s167 = scvt.s32.f32 %s166
      %s168 = smul.f32 %s167, 256.0
      %v169 = vstv %s168
      %v170 = vrcp.pop %v169
      %v171 = vmul.f32 %v169, %v170
      %v172 = vsub.f32 1.0, %v171
      %v173 = vmul.f32 %v170, %v172
      %v174 = vadd.f32 %v170, %v173
      %vm175 = vweird.f32 %v169
      %vm176 = vweird.f32 %v170
      %vm177 = vmor %vm175, %vm176
      %v178 = vsel %vm177, %v170, %v174
      %v179 = vand.u32 2147483647, %v169
      %vm180 = vcmp.eq.f32.partialorder %v179, 8.507059e+37
      %v181 = vand.u32 %v169, 2147483648
      %v182 = vor.u32 1.1754944e-38, %v181
      %v183 = vsel %vm180, %v182, %v178
      %s184 = vtos %v183
      %v185 = vld [vmem:[#allocation2] sm:$0x3]
      %v186 = vstv %s184
      %v187 = vmul.f32 %v185, %v186
      %189 = vset.pattern.permute.xlu0 0
      %190 = vperm.xlu0 %189, %v187
      %v191 = vpop.permute.xlu0 %190
      %v193 = vperm.slane %v164, 0
      %v194 = vmul.f32 %v191, %v193
      %v196 = vperm.slane %v165, 0
      %v198 = vadd.f32 %v196, %v194
      %199 = vset.pattern.permute.xlu0 1
      %200 = vperm.xlu0 %199, %v187
      %v201 = vpop.permute.xlu0 %200
      %v203 = vperm.slane %v164, 1
      %v204 = vmul.f32 %v201, %v203
      %v205 = vadd.f32 %v198, %v204
      %206 = vset.pattern.permute.xlu0 2
      %207 = vperm.xlu0 %206, %v187
      %v208 = vpop.permute.xlu0 %207
      %v210 = vperm.slane %v164, 2
      %v211 = vmul.f32 %v208, %v210
      %v212 = vadd.f32 %v205, %v211
      %213 = vset.pattern.permute.xlu0 3
      %214 = vperm.xlu0 %213, %v187
      %v215 = vpop.permute.xlu0 %214
      %v217 = vperm.slane %v164, 3
      %v218 = vmul.f32 %v215, %v217
      %v219 = vadd.f32 %v212, %v218
      %220 = vst [vmem:[#allocation6] sm:$0x3] %v219
      %s221 = sld [smem:[#allocation5 + $0x1]]
      %s222 = scvt.s32.f32 %s221
      %s223 = smul.f32 %s222, 256.0
      %v224 = vstv %s223
      %v225 = vrcp.pop %v224
      %v226 = vmul.f32 %v224, %v225
      %v227 = vsub.f32 1.0, %v226
      %v228 = vmul.f32 %v225, %v227
      %v229 = vadd.f32 %v225, %v228
      %vm230 = vweird.f32 %v224
      %vm231 = vweird.f32 %v225
      %vm232 = vmor %vm230, %vm231
      %v233 = vsel %vm232, %v225, %v229
      %v234 = vand.u32 2147483647, %v224
      %vm235 = vcmp.eq.f32.partialorder %v234, 8.507059e+37
      %v236 = vand.u32 %v224, 2147483648
      %v237 = vor.u32 1.1754944e-38, %v236
      %v238 = vsel %vm235, %v237, %v233
      %s239 = vtos %v238
      %s240 = scalar_lea.vmem [#allocation2], 2
      %v241 = vld [vmem:[%s240] sm:$0x3]
      %v242 = vstv %s239
      %v243 = vmul.f32 %v241, %v242
      %245 = vset.pattern.permute.xlu0 0
      %246 = vperm.xlu0 %245, %v243
      %v247 = vpop.permute.xlu0 %246
      %v249 = vmul.f32 %v247, %v193
      %v250 = vadd.f32 %v196, %v249
      %251 = vset.pattern.permute.xlu0 1
      %252 = vperm.xlu0 %251, %v243
      %v253 = vpop.permute.xlu0 %252
      %v255 = vmul.f32 %v253, %v203
      %v256 = vadd.f32 %v250, %v255
      %257 = vset.pattern.permute.xlu0 2
      %258 = vperm.xlu0 %257, %v243
      %v259 = vpop.permute.xlu0 %258
      %v261 = vmul.f32 %v259, %v210
      %v262 = vadd.f32 %v256, %v261
      %263 = vset.pattern.permute.xlu0 3
      %264 = vperm.xlu0 %263, %v243
      %v265 = vpop.permute.xlu0 %264
      %v267 = vmul.f32 %v265, %v217
      %v268 = vadd.f32 %v262, %v267
      %s269 = scalar_lea.vmem [#allocation6], 2
      %270 = vst [vmem:[%s269] sm:$0x3] %v268
      %v271 = vmax.f32 %v219, %v268
      %s272 = scalar_lea.vmem [#allocation6], 4
      %273 = vst [vmem:[%s272] sm:$0x3] %v271
    $region25: #{_msc_head.1} parent=1 // pred_fallthru
      _
    // Predicated region
    $region26: #{_msc_head.1} parent=1 // pred_check
      _
    $region27: #{_msc_head.1} parent=1 // pred_check_branch
      %275 = sbr.rel (0) target = $region29
    $region28: #{_msc_head.1} parent=1 // pred_region
      %277 = vsyncadd [#allocation7], 0
      %s278 = sshll.u32 [#allocation6], 4
      %s279 = int_to_ptr.vmem [resolvable:$true] %s278
      %s280 = sshll.u32 %s5, 4
      %s281 = int_to_ptr.hbm [resolvable:$true] %s280
      %286 = dma.vmem_to_hbm [thread:$0]  %s279, 96, %s281, [#allocation7], 32, 32, 2
    $region29: #{_msc_head.1} parent=1 // pred_fallthru
      _
    // Predicated region
    $region30: #{_msc_head.1} parent=1 // pred_check
      _
    $region31: #{_msc_head.1} parent=1 // pred_check_branch
      %288 = sbr.rel (0) target = $region33
    $region32: #{_msc_head.1} parent=1 // pred_region
      %290 = dma.done [#allocation7], 96
    $region33: #{_msc_head.1} parent=1 // pred_fallthru
      _
    %291 = vsyncpa [#allocation7], 1

</llo_original>
